<compile_context>
chip_gen: v7x
topology: tpu7x:2x2x1
jax: 0.10.0
libtpu: 0.0.40
codegen_flags: <defaults>
</compile_context>

<pallas_src>
import functools
import math

import jax
import jax.numpy as jnp
from jax.experimental import pallas as pl
from jax.experimental.pallas import tpu as pltpu

LN_EPS = 1e-12
COMPUTE_DTYPE = jnp.bfloat16

# Tile preferences: sized so (inputs + weight + f32 accumulator + output) x 2 buffers stays far
# below v7x's 32 MiB scoped VMEM default while still amortizing the ~0.35us/grid-step overhead
# on v5e/v6e. All candidates are multiples of (8, 128) so blocks stay lane/sublane aligned.
TM, TN, TK, TI = 256, 512, 512, 512


def _tile(dim, pref):
    """Pick a lane/sublane-aligned tile that divides `dim`, else fall back to the full dim."""
    if dim <= pref:
        return dim
    for cand in (pref, 512, 384, 256, 128):
        if cand <= pref and dim % cand == 0:
            return cand
    # TODO(synk): handle ragged (non-multiple) dims with masked edge tiles instead of full-dim.
    return dim


# ----------------------------- in-kernel math helpers -----------------------------

def _erf(x):
    # Abramowitz & Stegun 7.1.26 polynomial (|err| < 1.5e-7); matches torch's exact-erf GELU
    # to f32 precision using only ops with guaranteed Mosaic lowerings.
    a1, a2, a3, a4, a5 = 0.254829592, -0.284496736, 1.421413741, -1.453152027, 1.061405429
    p = 0.3275911
    s = jnp.sign(x)
    ax = jnp.abs(x)
    t = 1.0 / (1.0 + p * ax)
    poly = ((((a5 * t + a4) * t + a3) * t + a2) * t + a1) * t
    return s * (1.0 - poly * jnp.exp(-ax * ax))


def _gelu(x):
    return 0.5 * x * (1.0 + _erf(x * (1.0 / math.sqrt(2.0))))


def _layernorm_f32(y, g, b):
    mu = jnp.mean(y, axis=-1, keepdims=True)
    var = jnp.mean(jnp.square(y - mu), axis=-1, keepdims=True)
    return (y - mu) * jax.lax.rsqrt(var + LN_EPS) * g + b


# ----------------------------- Pallas kernels -----------------------------

def _linear_kernel(x_ref, w_ref, b_ref, o_ref, acc_ref, *, activation):
    # Tiled y = x @ W + b with f32 accumulation; K is the last ("arbitrary") grid axis.
    @pl.when(pl.program_id(2) == 0)
    def _():
        acc_ref[...] = jnp.zeros_like(acc_ref)

    acc_ref[...] += jnp.dot(x_ref[...], w_ref[...], preferred_element_type=jnp.float32)

    @pl.when(pl.program_id(2) == pl.num_programs(2) - 1)
    def _():
        y = acc_ref[...] + b_ref[...].astype(jnp.float32)
        if activation == "gelu":
            y = _gelu(y)
        o_ref[...] = y.astype(o_ref.dtype)


def _linear_res_ln_kernel(x_ref, w_ref, b_ref, r_ref, g_ref, bb_ref, o_ref, acc_ref):
    # Tiled y = LayerNorm(x @ W + b + residual); output N tile spans the full hidden dim
    # so the LayerNorm epilogue sees complete rows.
    @pl.when(pl.program_id(1) == 0)
    def _():
        acc_ref[...] = jnp.zeros_like(acc_ref)

    acc_ref[...] += jnp.dot(x_ref[...], w_ref[...], preferred_element_type=jnp.float32)

    @pl.when(pl.program_id(1) == pl.num_programs(1) - 1)
    def _():
        y = acc_ref[...] + b_ref[...].astype(jnp.float32) + r_ref[...].astype(jnp.float32)
        o_ref[...] = _layernorm_f32(y, g_ref[...], bb_ref[...]).astype(o_ref.dtype)


def _ffn_kernel(x_ref, wi_ref, bi_ref, wo_ref, bo_ref, g_ref, bb_ref, o_ref, acc_ref):
    # Fused FFN: out = LayerNorm(GELU(x @ Wi + bi) @ Wo + bo + x), tiled over the intermediate
    # dim (grid axis 1). The GELU'd intermediate lives only in VMEM / registers.
    @pl.when(pl.program_id(1) == 0)
    def _():
        acc_ref[...] = jnp.zeros_like(acc_ref)

    h = jnp.dot(x_ref[...], wi_ref[...], preferred_element_type=jnp.float32)
    h = _gelu(h + bi_ref[...].astype(jnp.float32))
    acc_ref[...] += jnp.dot(h.astype(x_ref.dtype), wo_ref[...],
                            preferred_element_type=jnp.float32)

    @pl.when(pl.program_id(1) == pl.num_programs(1) - 1)
    def _():
        # residual is the kernel's own x tile (same tensor), so no extra input / HBM read.
        y = acc_ref[...] + bo_ref[...].astype(jnp.float32) + x_ref[...].astype(jnp.float32)
        o_ref[...] = _layernorm_f32(y, g_ref[...], bb_ref[...]).astype(o_ref.dtype)


def _attention_kernel(q_ref, k_ref, v_ref, m_ref, o_ref):
    # One (batch, head) per grid step: [S, HD] tiles, softmax over the key axis in f32.
    # Q is already pre-scaled by 1/sqrt(head_dim) (folded into the QKV projection weights).
    q = q_ref[0, 0]                                   # [S, HD] (compute dtype)
    k = k_ref[0, 0]
    v = v_ref[0, 0]
    mask = m_ref[0, 0].astype(jnp.float32)            # [1, S] additive mask

    scores = jnp.einsum("qd,kd->qk", q, k, preferred_element_type=jnp.float32)
    scores = scores + mask
    mx = jnp.max(scores, axis=-1, keepdims=True)
    e = jnp.exp(scores - mx)
    denom = jnp.sum(e, axis=-1, keepdims=True)
    probs = e * pl.reciprocal(denom, approx=True)
    ctx = jnp.dot(probs.astype(v.dtype), v, preferred_element_type=jnp.float32)
    o_ref[0, 0] = ctx.astype(o_ref.dtype)


def _layernorm_kernel(x_ref, g_ref, b_ref, o_ref):
    x = x_ref[...].astype(jnp.float32)
    o_ref[...] = _layernorm_f32(x, g_ref[...], b_ref[...]).astype(o_ref.dtype)


# ----------------------------- pallas_call wrappers -----------------------------

def linear(x, w, b, activation=None):
    m, kdim = x.shape
    n = w.shape[1]
    tm, tn, tk = _tile(m, TM), _tile(n, TN), _tile(kdim, TK)
    return pl.pallas_call(
        functools.partial(_linear_kernel, activation=activation),
        out_shape=jax.ShapeDtypeStruct((m, n), x.dtype),
        grid=(m // tm, n // tn, kdim // tk),
        in_specs=[
            pl.BlockSpec((tm, tk), lambda i, j, k: (i, k)),
            pl.BlockSpec((tk, tn), lambda i, j, k: (k, j)),
            pl.BlockSpec((1, tn), lambda i, j, k: (0, j)),
        ],
        out_specs=pl.BlockSpec((tm, tn), lambda i, j, k: (i, j)),
        scratch_shapes=[pltpu.VMEM((tm, tn), jnp.float32)],
        compiler_params=pltpu.CompilerParams(
            dimension_semantics=("parallel", "parallel", "arbitrary")),
    )(x, w, b)


def linear_res_ln(x, w, b, residual, g, beta):
    m, kdim = x.shape
    n = w.shape[1]
    tm, tk = _tile(m, TM), _tile(kdim, TK)
    return pl.pallas_call(
        _linear_res_ln_kernel,
        out_shape=jax.ShapeDtypeStruct((m, n), residual.dtype),
        grid=(m // tm, kdim // tk),
        in_specs=[
            pl.BlockSpec((tm, tk), lambda i, k: (i, k)),
            pl.BlockSpec((tk, n), lambda i, k: (k, 0)),
            pl.BlockSpec((1, n), lambda i, k: (0, 0)),
            pl.BlockSpec((tm, n), lambda i, k: (i, 0)),   # residual
            pl.BlockSpec((1, n), lambda i, k: (0, 0)),    # LN gamma
            pl.BlockSpec((1, n), lambda i, k: (0, 0)),    # LN beta
        ],
        out_specs=pl.BlockSpec((tm, n), lambda i, k: (i, 0)),
        scratch_shapes=[pltpu.VMEM((tm, n), jnp.float32)],
        compiler_params=pltpu.CompilerParams(
            dimension_semantics=("parallel", "arbitrary")),
    )(x, w, b, residual, g, beta)


def ffn_res_ln(x, wi, bi, wo, bo, g, beta):
    m, h = x.shape
    inter = wi.shape[1]
    tm, ti = _tile(m, TM), _tile(inter, TI)
    return pl.pallas_call(
        _ffn_kernel,
        out_shape=jax.ShapeDtypeStruct((m, h), x.dtype),
        grid=(m // tm, inter // ti),
        in_specs=[
            pl.BlockSpec((tm, h), lambda i, j: (i, 0)),   # x (also the residual)
            pl.BlockSpec((h, ti), lambda i, j: (0, j)),   # W_intermediate column tile
            pl.BlockSpec((1, ti), lambda i, j: (0, j)),   # b_intermediate tile
            pl.BlockSpec((ti, h), lambda i, j: (j, 0)),   # W_output row tile
            pl.BlockSpec((1, h), lambda i, j: (0, 0)),    # b_output
            pl.BlockSpec((1, h), lambda i, j: (0, 0)),    # LN gamma
            pl.BlockSpec((1, h), lambda i, j: (0, 0)),    # LN beta
        ],
        out_specs=pl.BlockSpec((tm, h), lambda i, j: (i, 0)),
        scratch_shapes=[pltpu.VMEM((tm, h), jnp.float32)],
        compiler_params=pltpu.CompilerParams(
            dimension_semantics=("parallel", "arbitrary")),
    )(x, wi, bi, wo, bo, g, beta)


def attention(q, k, v, ext_mask):
    B, NH, S, HD = q.shape
    qkv_spec = pl.BlockSpec((1, 1, S, HD), lambda b, h: (b, h, 0, 0))
    return pl.pallas_call(
        _attention_kernel,
        out_shape=jax.ShapeDtypeStruct((B, NH, S, HD), q.dtype),
        grid=(B, NH),
        in_specs=[qkv_spec, qkv_spec, qkv_spec,
                  pl.BlockSpec((1, 1, 1, S), lambda b, h: (b, 0, 0, 0))],
        out_specs=qkv_spec,
        compiler_params=pltpu.CompilerParams(
            dimension_semantics=("parallel", "parallel")),
    )(q, k, v, ext_mask)


def layernorm(x, g, b, out_dtype):
    m, h = x.shape
    tm = _tile(m, TM)
    return pl.pallas_call(
        _layernorm_kernel,
        out_shape=jax.ShapeDtypeStruct((m, h), out_dtype),
        grid=(m // tm,),
        in_specs=[pl.BlockSpec((tm, h), lambda i: (i, 0)),
                  pl.BlockSpec((1, h), lambda i: (0, 0)),
                  pl.BlockSpec((1, h), lambda i: (0, 0))],
        out_specs=pl.BlockSpec((tm, h), lambda i: (i, 0)),
        compiler_params=pltpu.CompilerParams(dimension_semantics=("parallel",)),
    )(x, g, b)


# ----------------------------- parameter init / prep -----------------------------

def init_params(key, cfg):
    # Matches SplitBertModel.init_weights: normal(0, initializer_range) weights, zero biases,
    # LayerNorm gamma=1 / beta=0.
    std = cfg["initializer_range"]
    H, I = cfg["hidden_size"], cfg["intermediate_size"]

    def normal(k, shape):
        return (std * jax.random.normal(k, shape)).astype(jnp.float32)

    keys = jax.random.split(key, 3 + cfg["num_hidden_layers"])
    params = {
        "word_emb": normal(keys[0], (cfg["vocab_size"], H)),
        "pos_emb": normal(keys[1], (cfg["max_position_embeddings"], H)),
        "type_emb": normal(keys[2], (cfg["type_vocab_size"], H)),
        "emb_ln_g": jnp.ones((H,), jnp.float32),
        "emb_ln_b": jnp.zeros((H,), jnp.float32),
        "layers": [],
    }
    for l in range(cfg["num_hidden_layers"]):
        lk = jax.random.split(keys[3 + l], 6)
        params["layers"].append({
            "q_w": normal(lk[0], (H, H)), "q_b": jnp.zeros((H,), jnp.float32),
            "k_w": normal(lk[1], (H, H)), "k_b": jnp.zeros((H,), jnp.float32),
            "v_w": normal(lk[2], (H, H)), "v_b": jnp.zeros((H,), jnp.float32),
            "ao_w": normal(lk[3], (H, H)), "ao_b": jnp.zeros((H,), jnp.float32),
            "ao_ln_g": jnp.ones((H,), jnp.float32), "ao_ln_b": jnp.zeros((H,), jnp.float32),
            "i_w": normal(lk[4], (H, I)), "i_b": jnp.zeros((I,), jnp.float32),
            "o_w": normal(lk[5], (I, H)), "o_b": jnp.zeros((H,), jnp.float32),
            "o_ln_g": jnp.ones((H,), jnp.float32), "o_ln_b": jnp.zeros((H,), jnp.float32),
        })
    return params


def prepare_params(params, cfg, compute_dtype=COMPUTE_DTYPE):
    """Fuse Q/K/V weights (with 1/sqrt(HD) folded into Q), cast matmul weights to bf16,
    keep biases and LayerNorm parameters in f32 (the epilogues run in f32 anyway)."""
    H = cfg["hidden_size"]
    NH = cfg["num_attention_heads"]
    scale = 1.0 / math.sqrt(H // NH)
    prepped = {
        "word_emb": params["word_emb"],
        "pos_emb": params["pos_emb"],
        "type_emb": params["type_emb"],
        "emb_ln_g": params["emb_ln_g"].reshape(1, H),
        "emb_ln_b": params["emb_ln_b"].reshape(1, H),
        "layers": [],
    }
    for p in params["layers"]:
        qkv_w = jnp.concatenate([p["q_w"] * scale, p["k_w"], p["v_w"]], axis=1)
        qkv_b = jnp.concatenate([p["q_b"] * scale, p["k_b"], p["v_b"]])
        prepped["layers"].append({
            "qkv_w": qkv_w.astype(compute_dtype),
            "qkv_b": qkv_b.reshape(1, -1).astype(jnp.float32),
            "ao_w": p["ao_w"].astype(compute_dtype),
            "ao_b": p["ao_b"].reshape(1, -1).astype(jnp.float32),
            "ao_ln_g": p["ao_ln_g"].reshape(1, -1),
            "ao_ln_b": p["ao_ln_b"].reshape(1, -1),
            "i_w": p["i_w"].astype(compute_dtype),
            "i_b": p["i_b"].reshape(1, -1).astype(jnp.float32),
            "o_w": p["o_w"].astype(compute_dtype),
            "o_b": p["o_b"].reshape(1, -1).astype(jnp.float32),
            "o_ln_g": p["o_ln_g"].reshape(1, -1),
            "o_ln_b": p["o_ln_b"].reshape(1, -1),
        })
    return prepped


# ----------------------------- forward pass -----------------------------

def splitbert_forward(params, input_ids, attention_mask, cfg, compute_dtype=COMPUTE_DTYPE):
    B, S = input_ids.shape
    H = cfg["hidden_size"]
    NH = cfg["num_attention_heads"]
    HD = H // NH

    # get_extended_attention_mask: (1 - mask)[:, None, None, :] * -10000
    ext_mask = (1.0 - attention_mask.astype(jnp.float32))[:, None, None, :] * -10000.0

    # BertEmbeddings: word + position + token_type (token_type_ids default to 0), then LayerNorm.
    # Table gathers kept as plain-JAX glue; normalization runs in the Pallas layernorm kernel.
    emb = (params["word_emb"][input_ids]
           + params["pos_emb"][jnp.arange(S)][None, :, :]
           + params["type_emb"][0][None, None, :])
    x = layernorm(emb.reshape(B * S, H), params["emb_ln_g"], params["emb_ln_b"],
                  out_dtype=compute_dtype)

    for p in params["layers"]:
        # BertSelfAttention: fused QKV projection (Q pre-scaled), per-(batch, head) attention.
        qkv = linear(x, p["qkv_w"], p["qkv_b"])                        # [B*S, 3H]
        qkv = qkv.reshape(B, S, 3, NH, HD).transpose(2, 0, 3, 1, 4)    # [3, B, NH, S, HD]
        ctx = attention(qkv[0], qkv[1], qkv[2], ext_mask)              # [B, NH, S, HD]
        ctx = ctx.transpose(0, 2, 1, 3).reshape(B * S, H)
        # BertSelfOutput: dense + residual + LayerNorm, fused in one kernel.
        x1 = linear_res_ln(ctx, p["ao_w"], p["ao_b"], x, p["ao_ln_g"], p["ao_ln_b"])
        # BertIntermediate + BertOutput: GELU matmul + output matmul + residual + LayerNorm,
        # fused so the [B*S, I] intermediate never hits HBM.
        x = ffn_res_ln(x1, p["i_w"], p["i_b"], p["o_w"], p["o_b"], p["o_ln_g"], p["o_ln_b"])

    return x.reshape(B, S, H).astype(jnp.float32)


# ----------------------------- main -----------------------------

if __name__ == "__main__":
    cfg = dict(
        vocab_size=100,
        hidden_size=32,
        num_hidden_layers=2,
        num_attention_heads=4,
        intermediate_size=64,
        max_position_embeddings=64,
        type_vocab_size=2,
        initializer_range=0.02,
    )
    B, S = 2, 8

    key = jax.random.PRNGKey(0)
    k_param, k_ids = jax.random.split(key)
    params = prepare_params(init_params(k_param, cfg), cfg)

    input_ids = jax.random.randint(k_ids, (B, S), 0, cfg["vocab_size"], dtype=jnp.int32)
    attention_mask = jnp.ones((B, S), jnp.int32).at[1, -2:].set(0)  # pad last 2 tokens of seq 1

    out = splitbert_forward(params, input_ids, attention_mask, cfg)
    out = jax.block_until_ready(out)
    assert out.shape == (B, S, cfg["hidden_size"])
    assert bool(jnp.all(jnp.isfinite(out)))
    print("KERNEL_OK")
</pallas_src>

<mosaic_0001>
module attributes {stable_mosaic.version = 11 : i64} {
  func.func @_layernorm_kernel(%arg0: i32, %arg1: memref<16x32xf32, #tpu.memory_space<vmem>>, %arg2: memref<1x32xf32, #tpu.memory_space<vmem>>, %arg3: memref<1x32xf32, #tpu.memory_space<vmem>>, %arg4: memref<16x32xbf16, #tpu.memory_space<vmem>>) attributes {dimension_semantics = [#tpu.dimension_semantics<parallel>], iteration_bounds = array<i64: 1>, scalar_prefetch = 0 : i64, scratch_operands = 0 : i64, tpu.core_type = #tpu.core_type<tc>, window_params = [{transform_indices = @transform_0, window_bounds = array<i64: 16, 32>}, {pipeline_mode = #tpu.pipeline_mode<synchronous>, transform_indices = @transform_1, window_bounds = array<i64: 1, 32>}, {pipeline_mode = #tpu.pipeline_mode<synchronous>, transform_indices = @transform_2, window_bounds = array<i64: 1, 32>}, {transform_indices = @transform_3, window_bounds = array<i64: 16, 32>}]} {
    %c0 = arith.constant 0 : index
    %c0_0 = arith.constant 0 : index
    %0 = vector.load %arg1[%c0, %c0_0] : memref<16x32xf32, #tpu.memory_space<vmem>>, vector<16x32xf32>
    %c0_1 = arith.constant 0 : index
    %c0_2 = arith.constant 0 : index
    %1 = vector.load %arg2[%c0_1, %c0_2] : memref<1x32xf32, #tpu.memory_space<vmem>>, vector<1x32xf32>
    %c0_3 = arith.constant 0 : index
    %c0_4 = arith.constant 0 : index
    %2 = vector.load %arg3[%c0_3, %c0_4] : memref<1x32xf32, #tpu.memory_space<vmem>>, vector<1x32xf32>
    %cst = arith.constant dense<0.000000e+00> : vector<16xf32>
    %3 = vector.multi_reduction <add>, %0, %cst [1] : vector<16x32xf32> to vector<16xf32>
    %4 = vector.shape_cast %3 : vector<16xf32> to vector<16x1xf32>
    %cst_5 = arith.constant 3.200000e+01 : f32
    %5 = vector.broadcast %cst_5 : f32 to vector<16x1xf32>
    %6 = arith.divf %4, %5 : vector<16x1xf32>
    %7 = vector.broadcast %6 : vector<16x1xf32> to vector<16x32xf32>
    %8 = arith.subf %0, %7 : vector<16x32xf32>
    %9 = arith.mulf %8, %8 : vector<16x32xf32>
    %cst_6 = arith.constant dense<0.000000e+00> : vector<16xf32>
    %10 = vector.multi_reduction <add>, %9, %cst_6 [1] : vector<16x32xf32> to vector<16xf32>
    %11 = vector.shape_cast %10 : vector<16xf32> to vector<16x1xf32>
    %cst_7 = arith.constant 3.200000e+01 : f32
    %12 = vector.broadcast %cst_7 : f32 to vector<16x1xf32>
    %13 = arith.divf %11, %12 : vector<16x1xf32>
    %14 = vector.broadcast %6 : vector<16x1xf32> to vector<16x32xf32>
    %15 = arith.subf %0, %14 : vector<16x32xf32>
    %cst_8 = arith.constant 9.99999996E-13 : f32
    %16 = vector.broadcast %cst_8 : f32 to vector<16x1xf32>
    %17 = arith.addf %13, %16 : vector<16x1xf32>
    %18 = math.rsqrt %17 : vector<16x1xf32>
    %19 = vector.broadcast %18 : vector<16x1xf32> to vector<16x32xf32>
    %20 = arith.mulf %15, %19 : vector<16x32xf32>
    %21 = vector.broadcast %1 : vector<1x32xf32> to vector<16x32xf32>
    %22 = arith.mulf %20, %21 : vector<16x32xf32>
    %23 = vector.broadcast %2 : vector<1x32xf32> to vector<16x32xf32>
    %24 = arith.addf %22, %23 : vector<16x32xf32>
    %25 = arith.truncf %24 : vector<16x32xf32> to vector<16x32xbf16>
    %c0_9 = arith.constant 0 : index
    %c0_10 = arith.constant 0 : index
    %26 = vector.load %arg4[%c0_9, %c0_10] : memref<16x32xbf16, #tpu.memory_space<vmem>>, vector<16x32xbf16>
    tpu.vector_store %arg4[%c0_9, %c0_10], %25 {strides = array<i32>} : memref<16x32xbf16, #tpu.memory_space<vmem>>, vector<16x32xbf16>,
    return
  }
  func.func @transform_0(%arg0: i32) -> (i32, i32) {
    %c0_i32 = arith.constant 0 : i32
    %c0_i32_0 = arith.constant 0 : i32
    return %arg0, %c0_i32 : i32, i32
  }
  func.func @transform_1(%arg0: i32) -> (i32, i32) {
    %c0_i32 = arith.constant 0 : i32
    %c0_i32_0 = arith.constant 0 : i32
    %c0_i32_1 = arith.constant 0 : i32
    return %c0_i32, %c0_i32_0 : i32, i32
  }
  func.func @transform_2(%arg0: i32) -> (i32, i32) {
    %c0_i32 = arith.constant 0 : i32
    %c0_i32_0 = arith.constant 0 : i32
    %c0_i32_1 = arith.constant 0 : i32
    return %c0_i32, %c0_i32_0 : i32, i32
  }
  func.func @transform_3(%arg0: i32) -> (i32, i32) {
    %c0_i32 = arith.constant 0 : i32
    %c0_i32_0 = arith.constant 0 : i32
    return %arg0, %c0_i32 : i32, i32
  }
}

</mosaic_0001>

<llo_original>
// kernel: tpu_custom_call.1
$region0: #{tpu_custom_call.1}
  #allocation0 [shape = 'u32[]', space=smem, size = 0x4, offset = 0x4, fixed_abs, tag = 'smem constant byte address 0x4 - core index']
  #allocation1 [shape = 'u32[144,128]{1,0:T(1,128)}', space=vmem, size = 0x12000, scoped, tag = 'internal scratch']
  %s0 = inlined_call_operand.hbm [shape: f32[16,32], index: 0, kind: input, shape index: {}]
  %s1 = inlined_call_operand.vmem [shape: f32[1,32], index: 1, kind: input, shape index: {}]
  %s2 = inlined_call_operand.vmem [shape: f32[1,32], index: 2, kind: input, shape index: {}]
  %s3 = inlined_call_operand.hbm [shape: bf16[16,32], index: 3, kind: output, shape index: {}]
  %s4 = sld [smem:[#allocation0]]
  $region26: #{tpu_custom_call.1} parent=0
    _
  %s6 = ssub.s32 1, %s4
  %s7 = scalar_select 0, %s6, %s4
  $region1: #{tpu_custom_call.1} parent=0
    #allocation2 [shape = 'u8[8192]{0}', space=vmem, size = 0x2000, scoped, tag = 'input window, operand 0, single buffered']
    #allocation3 [shape = 's32[1]{0}', space=sflag, size = 0x4, scoped, tag = 'scoped memory for tpu_custom_call.1']
    #allocation4 [shape = 's32[1]{0}', space=sflag, size = 0x4, scoped, tag = 'scoped memory for tpu_custom_call.1']
    #allocation5 [shape = 'u8[4096]{0}', space=vmem, size = 0x1000, scoped, tag = 'output window, operand 0, single buffered']
    %8 = vsyncpa [#allocation3], 0
    %9 = vsyncpa [#allocation4], 0
    // Predicated region
    $region2: #{tpu_custom_call.1} parent=1 // pred_check
      _
    $region3: #{tpu_custom_call.1} parent=1 // pred_check_branch
      %11 = sbr.rel (0) target = $region5
    $region4: #{tpu_custom_call.1} parent=1 // pred_region
      %s13 = ssub.s32 256, 256
      %14 = vsyncadd [#allocation3], %s13
      %s15 = sshll.u32 [#allocation2], 4
      %s16 = int_to_ptr.vmem [resolvable:$true] %s15
      %21 = dma.hbm_to_vmem [thread:$0]  %s0, 256, %s16, [#allocation3], 128, 128, 8
    $region5: #{tpu_custom_call.1} parent=1 // pred_fallthru
      _
    // Predicated region
    $region6: #{tpu_custom_call.1} parent=1 // pred_check
      _
    $region7: #{tpu_custom_call.1} parent=1 // pred_check_branch
      %23 = sbr.rel (0) target = $region9
    $region8: #{tpu_custom_call.1} parent=1 // pred_region
      _
    $region9: #{tpu_custom_call.1} parent=1 // pred_fallthru
      _
    // Predicated region
    $region10: #{tpu_custom_call.1} parent=1 // pred_check
      _
    $region11: #{tpu_custom_call.1} parent=1 // pred_check_branch
      %25 = sbr.rel (0) target = $region13
    $region12: #{tpu_custom_call.1} parent=1 // pred_region
      _
    $region13: #{tpu_custom_call.1} parent=1 // pred_fallthru
      _
    // Predicated region
    $region14: #{tpu_custom_call.1} parent=1 // pred_check
      _
    $region15: #{tpu_custom_call.1} parent=1 // pred_check_branch
      %27 = sbr.rel (0) target = $region17
    $region16: #{tpu_custom_call.1} parent=1 // pred_region
      %28 = dma.done [#allocation3], 256
    $region17: #{tpu_custom_call.1} parent=1 // pred_fallthru
      _
    %v29 = vld [vmem:[#allocation2] sm:$0xff]
    %v30 = vld [vmem:[#allocation2 + $0x8] sm:$0xff]
    %v31 = vld [vmem:[%s1] sm:$0x1]
    %v32 = vld [vmem:[%s2] sm:$0x1]
    %vm33 = vcmask 261120
    %v34 = vsel %vm33, %v29, 0.0
    %35 = vadd.xlane.f32.xlu0 %v34
    %v36 = vpop.xlane.xlu0 %35
    %v37 = vsel %vm33, %v30, 0.0
    %38 = vadd.xlane.f32.xlu0 %v37
    %v39 = vpop.xlane.xlu0 %38
    %v40 = vrcp.pop 32.0
    %v41 = vmul.f32 %v36, %v40
    %v42 = vmul.f32 %v39, %v40
    %v43 = vsub.f32 %v29, %v41
    %v44 = vsub.f32 %v30, %v42
    %v45 = vmul.f32 %v43, %v43
    %v46 = vmul.f32 %v44, %v44
    %v47 = vsel %vm33, %v45, 0.0
    %48 = vadd.xlane.f32.xlu0 %v47
    %v49 = vpop.xlane.xlu0 %48
    %v50 = vsel %vm33, %v46, 0.0
    %51 = vadd.xlane.f32.xlu0 %v50
    %v52 = vpop.xlane.xlu0 %51
    %v53 = vmul.f32 %v49, %v40
    %v54 = vmul.f32 %v52, %v40
    %v55 = vadd.f32 %v53, 1e-12
    %v56 = vadd.f32 %v54, 1e-12
    %v57 = vrsqrt.pop %v55
    %v58 = vrsqrt.pop %v56
    %v59 = vmul.f32 %v43, %v57
    %v60 = vmul.f32 %v44, %v58
    %v62 = vlaneseq
    %v63 = vshrl.u32 %v62, 7
    %v64 = vsub.s32 0, %v63
    %v65 = vrot.slane %v31, %v64
    %v67 = vmul.f32 %v59, %v65
    %v68 = vmul.f32 %v60, %v65
    %v70 = vlaneseq
    %v71 = vshrl.u32 %v70, 7
    %v72 = vsub.s32 0, %v71
    %v73 = vrot.slane %v32, %v72
    %v75 = vadd.f32 %v67, %v73
    %v76 = vadd.f32 %v68, %v73
    %v77 = vpack.c.bf16 %v76, %v75
    %v79 = vunpack.c.l.b16 %v77
    %v80 = vunpack.c.h.b16 %v77
    %v81 = vpack.c.b16 %v79, %v79
    %v82 = vpack.c.b16 %v80, %v80
    %vm85 = vcmask 257024
    %86 = vst.msk [vmem:[#allocation5] sm:$0xf] %vm85, %v81
    %87 = vst.msk [vmem:[#allocation5 + $0x4] sm:$0xf] %vm85, %v82
    // Predicated region
    $region18: #{tpu_custom_call.1} parent=1 // pred_check
      _
    $region19: #{tpu_custom_call.1} parent=1 // pred_check_branch
      %89 = sbr.rel (0) target = $region21
    $region20: #{tpu_custom_call.1} parent=1 // pred_region
      %s91 = ssub.s32 128, 128
      %92 = vsyncadd [#allocation4], %s91
      %s93 = sshll.u32 [#allocation5], 4
      %s94 = int_to_ptr.vmem [resolvable:$true] %s93
      %99 = dma.vmem_to_hbm [thread:$0]  %s94, 128, %s3, [#allocation4], 64, 64, 4
    $region21: #{tpu_custom_call.1} parent=1 // pred_fallthru
      _
    // Predicated region
    $region22: #{tpu_custom_call.1} parent=1 // pred_check
      _
    $region23: #{tpu_custom_call.1} parent=1 // pred_check_branch
      %101 = sbr.rel (0) target = $region25
    $region24: #{tpu_custom_call.1} parent=1 // pred_region
      %102 = dma.done [#allocation4], 128
    $region25: #{tpu_custom_call.1} parent=1 // pred_fallthru
      _
    %103 = vsyncpa [#allocation3], 1
    %104 = vsyncpa [#allocation4], 1

</llo_original>
